<compile_context>
chip_gen: v7x
topology: tpu7x:2x2x1
jax: 0.10.0
libtpu: 0.0.40
codegen_flags: <defaults>
</compile_context>

<pallas_src>
import functools

import jax
import jax.numpy as jnp
from jax.experimental import pallas as pl
from jax.experimental.pallas import tpu as pltpu


def _prop_kernel(m_ref, w_ref, b_ref, x_ref, o_ref, *, c_in, c_out):
    """One grid step.

    m_ref: (V, V) f32 VMEM         -- collapsed propagation matrix (resident)
    w_ref: (c_out, c_in) f32 SMEM  -- 1x1 conv weight (scalar reads)
    b_ref: (c_out,) f32 SMEM       -- bias (scalar reads)
    x_ref: (c_in, V, T) or (1, c_in, V, T) VMEM
    o_ref: (c_out, V, T) or (1, c_out, V, T) VMEM
    """
    has_batch = len(x_ref.shape) == 4          # NCHW path keeps a leading 1
    m = m_ref[...]                              # (V, V)

    def xin(c):
        return x_ref[0, c] if has_batch else x_ref[c]      # (V, T)

    def store(o, val):
        val = val.astype(o_ref.dtype)
        if has_batch:
            o_ref[0, o] = val
        else:
            o_ref[o] = val

    if c_in <= c_out:
        # Propagate each input channel once (c_in MXU dots), then mix channels
        # on the VPU with scalar weights from SMEM.
        hs = [jnp.dot(m, xin(c), preferred_element_type=jnp.float32)
              for c in range(c_in)]
        for o in range(c_out):
            acc = hs[0] * w_ref[o, 0]
            for c in range(1, c_in):
                acc = acc + hs[c] * w_ref[o, c]
            store(o, acc + b_ref[o])
    else:
        # Mix channels first (down to c_out), then propagate: c_out MXU dots.
        for o in range(c_out):
            acc = xin(0) * w_ref[o, 0]
            for c in range(1, c_in):
                acc = acc + xin(c) * w_ref[o, c]
            store(o, jnp.dot(m, acc, preferred_element_type=jnp.float32)
                  + b_ref[o])


def _propagation_matrix(adj, gdep, alpha):
    """M = alpha * sum_{k<gdep} A_b^k + A_b^gdep with A_b = (1-alpha)*a_norm."""
    v = adj.shape[0]
    hi = jax.lax.Precision.HIGHEST
    a = adj + jnp.eye(v, dtype=adj.dtype)
    a = a / jnp.sum(a, axis=1, keepdims=True)      # row-normalize (no 0 guard,
    a_b = (1.0 - alpha) * a                        #  same as the PyTorch ref)
    p = jnp.eye(v, dtype=a.dtype)                  # A_b^0
    s = jnp.zeros_like(a)
    for _ in range(gdep):
        s = s + p
        p = jnp.dot(a_b, p, precision=hi)
    return alpha * s + p                           # gdep == 0 -> identity


def _pick_tile(length, c_in, c_out, v):
    """Tile of the lane axis: full axis if not 128-aligned, else a multiple of
    128 capped by vreg pressure (~48 live vregs) and a v7x-safe VMEM budget."""
    if length % 128 != 0:
        return length
    rows = max(1, -(-v // 8))                      # ceil(v/8) sublane groups
    live_tiles = c_in + 2                          # hs + accumulator + slack
    cap_vreg = (48 * 128) // max(1, live_tiles * rows)
    cap_vmem = (24 * 1024 * 1024) // max(1, 2 * (c_in + c_out) * v * 4)
    cap = max(128, min(cap_vreg, cap_vmem, 1024))
    t = (cap // 128) * 128
    while length % t != 0:
        t -= 128
    return t


def _maybe_split(length, t, other_parallel_steps):
    """Ensure >=2 parallel grid steps when cheap (v7x has 2 TensorCores)."""
    if other_parallel_steps * (length // t) < 2 and t % 256 == 0:
        return t // 2
    return t


def _vmem_limit(c_in, c_out, v, t):
    block_bytes = 2 * (c_in + c_out) * v * t * 4 + v * v * 4
    return int(min(48 * 1024 * 1024, max(16 * 1024 * 1024, 2 * block_bytes)))


@functools.partial(jax.jit, static_argnames=("gdep", "alpha"))
def prop_forward(x, adj, weight, bias, *, gdep, alpha):
    """Forward pass of `prop` (graph propagation + 1x1 conv), NCHW in/out.

    x:      (N, C_in, V, L) float32
    adj:    (V, V) float32
    weight: (C_out, C_in, 1, 1) float32  (PyTorch Conv2d layout)
    bias:   (C_out,) float32
    returns (N, C_out, V, L) float32
    """
    n, c_in, v, l = x.shape
    c_out = weight.shape[0]

    m = _propagation_matrix(adj, gdep, float(alpha))   # tiny (V,V), wrapper-side
    w2d = weight.reshape(c_out, c_in)                  # free reshape (1x1 dims)
    b1d = bias.reshape(c_out)

    kernel = functools.partial(_prop_kernel, c_in=c_in, c_out=c_out)

    if l % 128 == 0:
        # Lane-aligned L: operate directly on NCHW (no wrapper transpose).
        t_l = _pick_tile(l, c_in, c_out, v)
        t_l = _maybe_split(l, t_l, n)
        grid = (n, l // t_l)
        return pl.pallas_call(
            kernel,
            out_shape=jax.ShapeDtypeStruct((n, c_out, v, l), x.dtype),
            grid_spec=pltpu.PrefetchScalarGridSpec(
                num_scalar_prefetch=0,
                grid=grid,
                in_specs=[
                    # collapsed propagation matrix: resident small block
                    pl.BlockSpec((v, v), lambda i, j: (0, 0)),
                    # conv weight + bias: scalar tables in SMEM, untiled
                    pl.BlockSpec(memory_space=pltpu.MemorySpace.SMEM),
                    pl.BlockSpec(memory_space=pltpu.MemorySpace.SMEM),
                    # activations in NCHW: one (batch, L-tile) slab per step
                    pl.BlockSpec((1, c_in, v, t_l), lambda i, j: (i, 0, 0, j)),
                ],
                out_specs=pl.BlockSpec((1, c_out, v, t_l),
                                       lambda i, j: (i, 0, 0, j)),
            ),
            compiler_params=pltpu.CompilerParams(
                dimension_semantics=("parallel", "parallel"),
                vmem_limit_bytes=_vmem_limit(c_in, c_out, v, t_l)),
        )(m, w2d, b1d, x)

    # L < 128 (or unaligned): fold the batch into the lane axis so compute and
    # output stores are lane-denser ((N,C,V,L) -> (C,V,N*L); tensors this small
    # make the wrapper transpose negligible).
    nl = n * l
    xs = jnp.transpose(x, (1, 2, 0, 3)).reshape(c_in, v, nl)
    t = _pick_tile(nl, c_in, c_out, v)
    t = _maybe_split(nl, t, 1)
    grid = (nl // t,)
    out2 = pl.pallas_call(
        kernel,
        out_shape=jax.ShapeDtypeStruct((c_out, v, nl), x.dtype),
        grid_spec=pltpu.PrefetchScalarGridSpec(
            num_scalar_prefetch=0,
            grid=grid,
            in_specs=[
                pl.BlockSpec((v, v), lambda i: (0, 0)),
                pl.BlockSpec(memory_space=pltpu.MemorySpace.SMEM),
                pl.BlockSpec(memory_space=pltpu.MemorySpace.SMEM),
                pl.BlockSpec((c_in, v, t), lambda i: (0, 0, i)),
            ],
            out_specs=pl.BlockSpec((c_out, v, t), lambda i: (0, 0, i)),
        ),
        compiler_params=pltpu.CompilerParams(
            dimension_semantics=("parallel",),
            vmem_limit_bytes=_vmem_limit(c_in, c_out, v, t)),
    )(m, w2d, b1d, xs)
    return jnp.transpose(out2.reshape(c_out, v, n, l), (2, 0, 1, 3))


def _prop_reference(x, adj, weight, bias, gdep, alpha):
    v = adj.shape[0]
    a = adj + jnp.eye(v, dtype=adj.dtype)
    a = a / jnp.sum(a, axis=1, keepdims=True)
    hi = jax.lax.Precision.HIGHEST
    h = x
    for _ in range(gdep):
        h = alpha * x + (1.0 - alpha) * jnp.einsum(
            "ncwl,vw->ncvl", h, a, precision=hi)
    c_out, c_in = weight.shape[0], weight.shape[1]
    out = jnp.einsum("ncvl,oc->novl", h, weight.reshape(c_out, c_in),
                     precision=hi)
    return out + bias.reshape(1, c_out, 1, 1)


if __name__ == "__main__":
    key = jax.random.PRNGKey(0)
    kx, ka, kw, kb = jax.random.split(key, 4)

    N, C_IN, C_OUT, V, L = 2, 4, 8, 16, 16
    GDEP, ALPHA = 2, 0.05   # dropout attr of the module is unused in forward

    x = jax.random.normal(kx, (N, C_IN, V, L), dtype=jnp.float32)
    adj = jax.random.uniform(ka, (V, V), dtype=jnp.float32)
    bound = 1.0 / (C_IN ** 0.5)
    weight = jax.random.uniform(kw, (C_OUT, C_IN, 1, 1),
                                minval=-bound, maxval=bound, dtype=jnp.float32)
    bias = jax.random.uniform(kb, (C_OUT,),
                              minval=-bound, maxval=bound, dtype=jnp.float32)

    # Small-L (lane-folded) path.
    out = prop_forward(x, adj, weight, bias, gdep=GDEP, alpha=ALPHA)
    out = jax.block_until_ready(out)
    ref = _prop_reference(x, adj, weight, bias, GDEP, ALPHA)
    assert out.shape == (N, C_OUT, V, L)
    err = float(jnp.max(jnp.abs(out - ref)))
    assert jnp.allclose(out, ref, atol=1e-3, rtol=1e-3), err

    # Lane-aligned NCHW path (L multiple of 128).
    L2 = 128
    x2 = jax.random.normal(kx, (N, C_IN, V, L2), dtype=jnp.float32)
    out2 = prop_forward(x2, adj, weight, bias, gdep=GDEP, alpha=ALPHA)
    out2 = jax.block_until_ready(out2)
    ref2 = _prop_reference(x2, adj, weight, bias, GDEP, ALPHA)
    assert out2.shape == (N, C_OUT, V, L2)
    err2 = float(jnp.max(jnp.abs(out2 - ref2)))
    assert jnp.allclose(out2, ref2, atol=1e-3, rtol=1e-3), err2

    print("KERNEL_OK")
</pallas_src>

<mosaic_0001>
module attributes {stable_mosaic.version = 11 : i64} {
  func.func @_prop_kernel(%arg0: i32, %arg1: memref<16x16xf32, #tpu.memory_space<vmem>>, %arg2: memref<8x4xf32, #tpu.memory_space<smem>>, %arg3: memref<8xf32, #tpu.memory_space<smem>>, %arg4: memref<4x16x32xf32, #tpu.memory_space<vmem>>, %arg5: memref<8x16x32xf32, #tpu.memory_space<vmem>>) attributes {dimension_semantics = [#tpu.dimension_semantics<parallel>], iteration_bounds = array<i64: 1>, scalar_prefetch = 0 : i64, scratch_operands = 0 : i64, tpu.core_type = #tpu.core_type<tc>, window_params = [{pipeline_mode = #tpu.pipeline_mode<synchronous>, transform_indices = @transform_0, window_bounds = array<i64: 16, 16>}, {transform_indices = @transform_1, window_bounds = array<i64: 8, 4>}, {transform_indices = @transform_2, window_bounds = array<i64: 8>}, {transform_indices = @transform_3, window_bounds = array<i64: 4, 16, 32>}, {transform_indices = @transform_4, window_bounds = array<i64: 8, 16, 32>}]} {
    %c0 = arith.constant 0 : index
    %c0_0 = arith.constant 0 : index
    %0 = vector.load %arg1[%c0, %c0_0] : memref<16x16xf32, #tpu.memory_space<vmem>>, vector<16x16xf32>
    %c0_1 = arith.constant 0 : index
    %c0_2 = arith.constant 0 : index
    %c0_3 = arith.constant 0 : index
    %1 = vector.load %arg4[%c0_1, %c0_2, %c0_3] : memref<4x16x32xf32, #tpu.memory_space<vmem>>, vector<1x16x32xf32>
    %2 = vector.shape_cast %1 : vector<1x16x32xf32> to vector<16x32xf32>
    %cst = arith.constant dense<0.000000e+00> : vector<16x32xf32>
    %3 = tpu.matmul %0, %2, %cst {dimension_numbers = #tpu.dot_dimension_numbers<[1], [0], [0], [1], [0, 0, 1, 1], [], []>} : vector<16x16xf32>, vector<16x32xf32>, vector<16x32xf32> -> vector<16x32xf32>
    %c1 = arith.constant 1 : index
    %c0_4 = arith.constant 0 : index
    %c0_5 = arith.constant 0 : index
    %4 = vector.load %arg4[%c1, %c0_4, %c0_5] : memref<4x16x32xf32, #tpu.memory_space<vmem>>, vector<1x16x32xf32>
    %5 = vector.shape_cast %4 : vector<1x16x32xf32> to vector<16x32xf32>
    %cst_6 = arith.constant dense<0.000000e+00> : vector<16x32xf32>
    %6 = tpu.matmul %0, %5, %cst_6 {dimension_numbers = #tpu.dot_dimension_numbers<[1], [0], [0], [1], [0, 0, 1, 1], [], []>} : vector<16x16xf32>, vector<16x32xf32>, vector<16x32xf32> -> vector<16x32xf32>
    %c2 = arith.constant 2 : index
    %c0_7 = arith.constant 0 : index
    %c0_8 = arith.constant 0 : index
    %7 = vector.load %arg4[%c2, %c0_7, %c0_8] : memref<4x16x32xf32, #tpu.memory_space<vmem>>, vector<1x16x32xf32>
    %8 = vector.shape_cast %7 : vector<1x16x32xf32> to vector<16x32xf32>
    %cst_9 = arith.constant dense<0.000000e+00> : vector<16x32xf32>
    %9 = tpu.matmul %0, %8, %cst_9 {dimension_numbers = #tpu.dot_dimension_numbers<[1], [0], [0], [1], [0, 0, 1, 1], [], []>} : vector<16x16xf32>, vector<16x32xf32>, vector<16x32xf32> -> vector<16x32xf32>
    %c3 = arith.constant 3 : index
    %c0_10 = arith.constant 0 : index
    %c0_11 = arith.constant 0 : index
    %10 = vector.load %arg4[%c3, %c0_10, %c0_11] : memref<4x16x32xf32, #tpu.memory_space<vmem>>, vector<1x16x32xf32>
    %11 = vector.shape_cast %10 : vector<1x16x32xf32> to vector<16x32xf32>
    %cst_12 = arith.constant dense<0.000000e+00> : vector<16x32xf32>
    %12 = tpu.matmul %0, %11, %cst_12 {dimension_numbers = #tpu.dot_dimension_numbers<[1], [0], [0], [1], [0, 0, 1, 1], [], []>} : vector<16x16xf32>, vector<16x32xf32>, vector<16x32xf32> -> vector<16x32xf32>
    %c0_13 = arith.constant 0 : index
    %c0_14 = arith.constant 0 : index
    %13 = memref.load %arg2[%c0_13, %c0_14] : memref<8x4xf32, #tpu.memory_space<smem>>
    %14 = vector.broadcast %13 : f32 to vector<16x32xf32>
    %15 = arith.mulf %3, %14 : vector<16x32xf32>
    %c0_15 = arith.constant 0 : index
    %c1_16 = arith.constant 1 : index
    %16 = memref.load %arg2[%c0_15, %c1_16] : memref<8x4xf32, #tpu.memory_space<smem>>
    %17 = vector.broadcast %16 : f32 to vector<16x32xf32>
    %18 = arith.mulf %6, %17 : vector<16x32xf32>
    %19 = arith.addf %15, %18 : vector<16x32xf32>
    %c0_17 = arith.constant 0 : index
    %c2_18 = arith.constant 2 : index
    %20 = memref.load %arg2[%c0_17, %c2_18] : memref<8x4xf32, #tpu.memory_space<smem>>
    %21 = vector.broadcast %20 : f32 to vector<16x32xf32>
    %22 = arith.mulf %9, %21 : vector<16x32xf32>
    %23 = arith.addf %19, %22 : vector<16x32xf32>
    %c0_19 = arith.constant 0 : index
    %c3_20 = arith.constant 3 : index
    %24 = memref.load %arg2[%c0_19, %c3_20] : memref<8x4xf32, #tpu.memory_space<smem>>
    %25 = vector.broadcast %24 : f32 to vector<16x32xf32>
    %26 = arith.mulf %12, %25 : vector<16x32xf32>
    %27 = arith.addf %23, %26 : vector<16x32xf32>
    %c0_21 = arith.constant 0 : index
    %28 = memref.load %arg3[%c0_21] : memref<8xf32, #tpu.memory_space<smem>>
    %29 = vector.broadcast %28 : f32 to vector<16x32xf32>
    %30 = arith.addf %27, %29 : vector<16x32xf32>
    %c0_22 = arith.constant 0 : index
    %c0_23 = arith.constant 0 : index
    %c0_24 = arith.constant 0 : index
    %31 = vector.load %arg5[%c0_22, %c0_23, %c0_24] : memref<8x16x32xf32, #tpu.memory_space<vmem>>, vector<1x16x32xf32>
    %32 = vector.shape_cast %31 : vector<1x16x32xf32> to vector<16x32xf32>
    %33 = vector.shape_cast %30 : vector<16x32xf32> to vector<1x16x32xf32>
    tpu.vector_store %arg5[%c0_22, %c0_23, %c0_24], %33 {strides = array<i32>} : memref<8x16x32xf32, #tpu.memory_space<vmem>>, vector<1x16x32xf32>,
    %c1_25 = arith.constant 1 : index
    %c0_26 = arith.constant 0 : index
    %34 = memref.load %arg2[%c1_25, %c0_26] : memref<8x4xf32, #tpu.memory_space<smem>>
    %35 = vector.broadcast %34 : f32 to vector<16x32xf32>
    %36 = arith.mulf %3, %35 : vector<16x32xf32>
    %c1_27 = arith.constant 1 : index
    %c1_28 = arith.constant 1 : index
    %37 = memref.load %arg2[%c1_27, %c1_28] : memref<8x4xf32, #tpu.memory_space<smem>>
    %38 = vector.broadcast %37 : f32 to vector<16x32xf32>
    %39 = arith.mulf %6, %38 : vector<16x32xf32>
    %40 = arith.addf %36, %39 : vector<16x32xf32>
    %c1_29 = arith.constant 1 : index
    %c2_30 = arith.constant 2 : index
    %41 = memref.load %arg2[%c1_29, %c2_30] : memref<8x4xf32, #tpu.memory_space<smem>>
    %42 = vector.broadcast %41 : f32 to vector<16x32xf32>
    %43 = arith.mulf %9, %42 : vector<16x32xf32>
    %44 = arith.addf %40, %43 : vector<16x32xf32>
    %c1_31 = arith.constant 1 : index
    %c3_32 = arith.constant 3 : index
    %45 = memref.load %arg2[%c1_31, %c3_32] : memref<8x4xf32, #tpu.memory_space<smem>>
    %46 = vector.broadcast %45 : f32 to vector<16x32xf32>
    %47 = arith.mulf %12, %46 : vector<16x32xf32>
    %48 = arith.addf %44, %47 : vector<16x32xf32>
    %c1_33 = arith.constant 1 : index
    %49 = memref.load %arg3[%c1_33] : memref<8xf32, #tpu.memory_space<smem>>
    %50 = vector.broadcast %49 : f32 to vector<16x32xf32>
    %51 = arith.addf %48, %50 : vector<16x32xf32>
    %c1_34 = arith.constant 1 : index
    %c0_35 = arith.constant 0 : index
    %c0_36 = arith.constant 0 : index
    %52 = vector.load %arg5[%c1_34, %c0_35, %c0_36] : memref<8x16x32xf32, #tpu.memory_space<vmem>>, vector<1x16x32xf32>
    %53 = vector.shape_cast %52 : vector<1x16x32xf32> to vector<16x32xf32>
    %54 = vector.shape_cast %51 : vector<16x32xf32> to vector<1x16x32xf32>
    tpu.vector_store %arg5[%c1_34, %c0_35, %c0_36], %54 {strides = array<i32>} : memref<8x16x32xf32, #tpu.memory_space<vmem>>, vector<1x16x32xf32>,
    %c2_37 = arith.constant 2 : index
    %c0_38 = arith.constant 0 : index
    %55 = memref.load %arg2[%c2_37, %c0_38] : memref<8x4xf32, #tpu.memory_space<smem>>
    %56 = vector.broadcast %55 : f32 to vector<16x32xf32>
    %57 = arith.mulf %3, %56 : vector<16x32xf32>
    %c2_39 = arith.constant 2 : index
    %c1_40 = arith.constant 1 : index
    %58 = memref.load %arg2[%c2_39, %c1_40] : memref<8x4xf32, #tpu.memory_space<smem>>
    %59 = vector.broadcast %58 : f32 to vector<16x32xf32>
    %60 = arith.mulf %6, %59 : vector<16x32xf32>
    %61 = arith.addf %57, %60 : vector<16x32xf32>
    %c2_41 = arith.constant 2 : index
    %c2_42 = arith.constant 2 : index
    %62 = memref.load %arg2[%c2_41, %c2_42] : memref<8x4xf32, #tpu.memory_space<smem>>
    %63 = vector.broadcast %62 : f32 to vector<16x32xf32>
    %64 = arith.mulf %9, %63 : vector<16x32xf32>
    %65 = arith.addf %61, %64 : vector<16x32xf32>
    %c2_43 = arith.constant 2 : index
    %c3_44 = arith.constant 3 : index
    %66 = memref.load %arg2[%c2_43, %c3_44] : memref<8x4xf32, #tpu.memory_space<smem>>
    %67 = vector.broadcast %66 : f32 to vector<16x32xf32>
    %68 = arith.mulf %12, %67 : vector<16x32xf32>
    %69 = arith.addf %65, %68 : vector<16x32xf32>
    %c2_45 = arith.constant 2 : index
    %70 = memref.load %arg3[%c2_45] : memref<8xf32, #tpu.memory_space<smem>>
    %71 = vector.broadcast %70 : f32 to vector<16x32xf32>
    %72 = arith.addf %69, %71 : vector<16x32xf32>
    %c2_46 = arith.constant 2 : index
    %c0_47 = arith.constant 0 : index
    %c0_48 = arith.constant 0 : index
    %73 = vector.load %arg5[%c2_46, %c0_47, %c0_48] : memref<8x16x32xf32, #tpu.memory_space<vmem>>, vector<1x16x32xf32>
    %74 = vector.shape_cast %73 : vector<1x16x32xf32> to vector<16x32xf32>
    %75 = vector.shape_cast %72 : vector<16x32xf32> to vector<1x16x32xf32>
    tpu.vector_store %arg5[%c2_46, %c0_47, %c0_48], %75 {strides = array<i32>} : memref<8x16x32xf32, #tpu.memory_space<vmem>>, vector<1x16x32xf32>,
    %c3_49 = arith.constant 3 : index
    %c0_50 = arith.constant 0 : index
    %76 = memref.load %arg2[%c3_49, %c0_50] : memref<8x4xf32, #tpu.memory_space<smem>>
    %77 = vector.broadcast %76 : f32 to vector<16x32xf32>
    %78 = arith.mulf %3, %77 : vector<16x32xf32>
    %c3_51 = arith.constant 3 : index
    %c1_52 = arith.constant 1 : index
    %79 = memref.load %arg2[%c3_51, %c1_52] : memref<8x4xf32, #tpu.memory_space<smem>>
    %80 = vector.broadcast %79 : f32 to vector<16x32xf32>
    %81 = arith.mulf %6, %80 : vector<16x32xf32>
    %82 = arith.addf %78, %81 : vector<16x32xf32>
    %c3_53 = arith.constant 3 : index
    %c2_54 = arith.constant 2 : index
    %83 = memref.load %arg2[%c3_53, %c2_54] : memref<8x4xf32, #tpu.memory_space<smem>>
    %84 = vector.broadcast %83 : f32 to vector<16x32xf32>
    %85 = arith.mulf %9, %84 : vector<16x32xf32>
    %86 = arith.addf %82, %85 : vector<16x32xf32>
    %c3_55 = arith.constant 3 : index
    %c3_56 = arith.constant 3 : index
    %87 = memref.load %arg2[%c3_55, %c3_56] : memref<8x4xf32, #tpu.memory_space<smem>>
    %88 = vector.broadcast %87 : f32 to vector<16x32xf32>
    %89 = arith.mulf %12, %88 : vector<16x32xf32>
    %90 = arith.addf %86, %89 : vector<16x32xf32>
    %c3_57 = arith.constant 3 : index
    %91 = memref.load %arg3[%c3_57] : memref<8xf32, #tpu.memory_space<smem>>
    %92 = vector.broadcast %91 : f32 to vector<16x32xf32>
    %93 = arith.addf %90, %92 : vector<16x32xf32>
    %c3_58 = arith.constant 3 : index
    %c0_59 = arith.constant 0 : index
    %c0_60 = arith.constant 0 : index
    %94 = vector.load %arg5[%c3_58, %c0_59, %c0_60] : memref<8x16x32xf32, #tpu.memory_space<vmem>>, vector<1x16x32xf32>
    %95 = vector.shape_cast %94 : vector<1x16x32xf32> to vector<16x32xf32>
    %96 = vector.shape_cast %93 : vector<16x32xf32> to vector<1x16x32xf32>
    tpu.vector_store %arg5[%c3_58, %c0_59, %c0_60], %96 {strides = array<i32>} : memref<8x16x32xf32, #tpu.memory_space<vmem>>, vector<1x16x32xf32>,
    %c4 = arith.constant 4 : index
    %c0_61 = arith.constant 0 : index
    %97 = memref.load %arg2[%c4, %c0_61] : memref<8x4xf32, #tpu.memory_space<smem>>
    %98 = vector.broadcast %97 : f32 to vector<16x32xf32>
    %99 = arith.mulf %3, %98 : vector<16x32xf32>
    %c4_62 = arith.constant 4 : index
    %c1_63 = arith.constant 1 : index
    %100 = memref.load %arg2[%c4_62, %c1_63] : memref<8x4xf32, #tpu.memory_space<smem>>
    %101 = vector.broadcast %100 : f32 to vector<16x32xf32>
    %102 = arith.mulf %6, %101 : vector<16x32xf32>
    %103 = arith.addf %99, %102 : vector<16x32xf32>
    %c4_64 = arith.constant 4 : index
    %c2_65 = arith.constant 2 : index
    %104 = memref.load %arg2[%c4_64, %c2_65] : memref<8x4xf32, #tpu.memory_space<smem>>
    %105 = vector.broadcast %104 : f32 to vector<16x32xf32>
    %106 = arith.mulf %9, %105 : vector<16x32xf32>
    %107 = arith.addf %103, %106 : vector<16x32xf32>
    %c4_66 = arith.constant 4 : index
    %c3_67 = arith.constant 3 : index
    %108 = memref.load %arg2[%c4_66, %c3_67] : memref<8x4xf32, #tpu.memory_space<smem>>
    %109 = vector.broadcast %108 : f32 to vector<16x32xf32>
    %110 = arith.mulf %12, %109 : vector<16x32xf32>
    %111 = arith.addf %107, %110 : vector<16x32xf32>
    %c4_68 = arith.constant 4 : index
    %112 = memref.load %arg3[%c4_68] : memref<8xf32, #tpu.memory_space<smem>>
    %113 = vector.broadcast %112 : f32 to vector<16x32xf32>
    %114 = arith.addf %111, %113 : vector<16x32xf32>
    %c4_69 = arith.constant 4 : index
    %c0_70 = arith.constant 0 : index
    %c0_71 = arith.constant 0 : index
    %115 = vector.load %arg5[%c4_69, %c0_70, %c0_71] : memref<8x16x32xf32, #tpu.memory_space<vmem>>, vector<1x16x32xf32>
    %116 = vector.shape_cast %115 : vector<1x16x32xf32> to vector<16x32xf32>
    %117 = vector.shape_cast %114 : vector<16x32xf32> to vector<1x16x32xf32>
    tpu.vector_store %arg5[%c4_69, %c0_70, %c0_71], %117 {strides = array<i32>} : memref<8x16x32xf32, #tpu.memory_space<vmem>>, vector<1x16x32xf32>,
    %c5 = arith.constant 5 : index
    %c0_72 = arith.constant 0 : index
    %118 = memref.load %arg2[%c5, %c0_72] : memref<8x4xf32, #tpu.memory_space<smem>>
    %119 = vector.broadcast %118 : f32 to vector<16x32xf32>
    %120 = arith.mulf %3, %119 : vector<16x32xf32>
    %c5_73 = arith.constant 5 : index
    %c1_74 = arith.constant 1 : index
    %121 = memref.load %arg2[%c5_73, %c1_74] : memref<8x4xf32, #tpu.memory_space<smem>>
    %122 = vector.broadcast %121 : f32 to vector<16x32xf32>
    %123 = arith.mulf %6, %122 : vector<16x32xf32>
    %124 = arith.addf %120, %123 : vector<16x32xf32>
    %c5_75 = arith.constant 5 : index
    %c2_76 = arith.constant 2 : index
    %125 = memref.load %arg2[%c5_75, %c2_76] : memref<8x4xf32, #tpu.memory_space<smem>>
    %126 = vector.broadcast %125 : f32 to vector<16x32xf32>
    %127 = arith.mulf %9, %126 : vector<16x32xf32>
    %128 = arith.addf %124, %127 : vector<16x32xf32>
    %c5_77 = arith.constant 5 : index
    %c3_78 = arith.constant 3 : index
    %129 = memref.load %arg2[%c5_77, %c3_78] : memref<8x4xf32, #tpu.memory_space<smem>>
    %130 = vector.broadcast %129 : f32 to vector<16x32xf32>
    %131 = arith.mulf %12, %130 : vector<16x32xf32>
    %132 = arith.addf %128, %131 : vector<16x32xf32>
    %c5_79 = arith.constant 5 : index
    %133 = memref.load %arg3[%c5_79] : memref<8xf32, #tpu.memory_space<smem>>
    %134 = vector.broadcast %133 : f32 to vector<16x32xf32>
    %135 = arith.addf %132, %134 : vector<16x32xf32>
    %c5_80 = arith.constant 5 : index
    %c0_81 = arith.constant 0 : index
    %c0_82 = arith.constant 0 : index
    %136 = vector.load %arg5[%c5_80, %c0_81, %c0_82] : memref<8x16x32xf32, #tpu.memory_space<vmem>>, vector<1x16x32xf32>
    %137 = vector.shape_cast %136 : vector<1x16x32xf32> to vector<16x32xf32>
    %138 = vector.shape_cast %135 : vector<16x32xf32> to vector<1x16x32xf32>
    tpu.vector_store %arg5[%c5_80, %c0_81, %c0_82], %138 {strides = array<i32>} : memref<8x16x32xf32, #tpu.memory_space<vmem>>, vector<1x16x32xf32>,
    %c6 = arith.constant 6 : index
    %c0_83 = arith.constant 0 : index
    %139 = memref.load %arg2[%c6, %c0_83] : memref<8x4xf32, #tpu.memory_space<smem>>
    %140 = vector.broadcast %139 : f32 to vector<16x32xf32>
    %141 = arith.mulf %3, %140 : vector<16x32xf32>
    %c6_84 = arith.constant 6 : index
    %c1_85 = arith.constant 1 : index
    %142 = memref.load %arg2[%c6_84, %c1_85] : memref<8x4xf32, #tpu.memory_space<smem>>
    %143 = vector.broadcast %142 : f32 to vector<16x32xf32>
    %144 = arith.mulf %6, %143 : vector<16x32xf32>
    %145 = arith.addf %141, %144 : vector<16x32xf32>
    %c6_86 = arith.constant 6 : index
    %c2_87 = arith.constant 2 : index
    %146 = memref.load %arg2[%c6_86, %c2_87] : memref<8x4xf32, #tpu.memory_space<smem>>
    %147 = vector.broadcast %146 : f32 to vector<16x32xf32>
    %148 = arith.mulf %9, %147 : vector<16x32xf32>
    %149 = arith.addf %145, %148 : vector<16x32xf32>
    %c6_88 = arith.constant 6 : index
    %c3_89 = arith.constant 3 : index
    %150 = memref.load %arg2[%c6_88, %c3_89] : memref<8x4xf32, #tpu.memory_space<smem>>
    %151 = vector.broadcast %150 : f32 to vector<16x32xf32>
    %152 = arith.mulf %12, %151 : vector<16x32xf32>
    %153 = arith.addf %149, %152 : vector<16x32xf32>
    %c6_90 = arith.constant 6 : index
    %154 = memref.load %arg3[%c6_90] : memref<8xf32, #tpu.memory_space<smem>>
    %155 = vector.broadcast %154 : f32 to vector<16x32xf32>
    %156 = arith.addf %153, %155 : vector<16x32xf32>
    %c6_91 = arith.constant 6 : index
    %c0_92 = arith.constant 0 : index
    %c0_93 = arith.constant 0 : index
    %157 = vector.load %arg5[%c6_91, %c0_92, %c0_93] : memref<8x16x32xf32, #tpu.memory_space<vmem>>, vector<1x16x32xf32>
    %158 = vector.shape_cast %157 : vector<1x16x32xf32> to vector<16x32xf32>
    %159 = vector.shape_cast %156 : vector<16x32xf32> to vector<1x16x32xf32>
    tpu.vector_store %arg5[%c6_91, %c0_92, %c0_93], %159 {strides = array<i32>} : memref<8x16x32xf32, #tpu.memory_space<vmem>>, vector<1x16x32xf32>,
    %c7 = arith.constant 7 : index
    %c0_94 = arith.constant 0 : index
    %160 = memref.load %arg2[%c7, %c0_94] : memref<8x4xf32, #tpu.memory_space<smem>>
    %161 = vector.broadcast %160 : f32 to vector<16x32xf32>
    %162 = arith.mulf %3, %161 : vector<16x32xf32>
    %c7_95 = arith.constant 7 : index
    %c1_96 = arith.constant 1 : index
    %163 = memref.load %arg2[%c7_95, %c1_96] : memref<8x4xf32, #tpu.memory_space<smem>>
    %164 = vector.broadcast %163 : f32 to vector<16x32xf32>
    %165 = arith.mulf %6, %164 : vector<16x32xf32>
    %166 = arith.addf %162, %165 : vector<16x32xf32>
    %c7_97 = arith.constant 7 : index
    %c2_98 = arith.constant 2 : index
    %167 = memref.load %arg2[%c7_97, %c2_98] : memref<8x4xf32, #tpu.memory_space<smem>>
    %168 = vector.broadcast %167 : f32 to vector<16x32xf32>
    %169 = arith.mulf %9, %168 : vector<16x32xf32>
    %170 = arith.addf %166, %169 : vector<16x32xf32>
    %c7_99 = arith.constant 7 : index
    %c3_100 = arith.constant 3 : index
    %171 = memref.load %arg2[%c7_99, %c3_100] : memref<8x4xf32, #tpu.memory_space<smem>>
    %172 = vector.broadcast %171 : f32 to vector<16x32xf32>
    %173 = arith.mulf %12, %172 : vector<16x32xf32>
    %174 = arith.addf %170, %173 : vector<16x32xf32>
    %c7_101 = arith.constant 7 : index
    %175 = memref.load %arg3[%c7_101] : memref<8xf32, #tpu.memory_space<smem>>
    %176 = vector.broadcast %175 : f32 to vector<16x32xf32>
    %177 = arith.addf %174, %176 : vector<16x32xf32>
    %c7_102 = arith.constant 7 : index
    %c0_103 = arith.constant 0 : index
    %c0_104 = arith.constant 0 : index
    %178 = vector.load %arg5[%c7_102, %c0_103, %c0_104] : memref<8x16x32xf32, #tpu.memory_space<vmem>>, vector<1x16x32xf32>
    %179 = vector.shape_cast %178 : vector<1x16x32xf32> to vector<16x32xf32>
    %180 = vector.shape_cast %177 : vector<16x32xf32> to vector<1x16x32xf32>
    tpu.vector_store %arg5[%c7_102, %c0_103, %c0_104], %180 {strides = array<i32>} : memref<8x16x32xf32, #tpu.memory_space<vmem>>, vector<1x16x32xf32>,
    return
  }
  func.func @transform_0(%arg0: i32) -> (i32, i32) {
    %c0_i32 = arith.constant 0 : i32
    %c0_i32_0 = arith.constant 0 : i32
    %c0_i32_1 = arith.constant 0 : i32
    return %c0_i32, %c0_i32_0 : i32, i32
  }
  func.func @transform_1(%arg0: i32) -> (i32, i32) {
    %c0_i32 = arith.constant 0 : i32
    %c0_i32_0 = arith.constant 0 : i32
    %c0_i32_1 = arith.constant 0 : i32
    return %c0_i32, %c0_i32_0 : i32, i32
  }
  func.func @transform_2(%arg0: i32) -> i32 {
    %c0_i32 = arith.constant 0 : i32
    %c0_i32_0 = arith.constant 0 : i32
    return %c0_i32 : i32
  }
  func.func @transform_3(%arg0: i32) -> (i32, i32, i32) {
    %c0_i32 = arith.constant 0 : i32
    %c0_i32_0 = arith.constant 0 : i32
    %c0_i32_1 = arith.constant 0 : i32
    return %c0_i32, %c0_i32_0, %arg0 : i32, i32, i32
  }
  func.func @transform_4(%arg0: i32) -> (i32, i32, i32) {
    %c0_i32 = arith.constant 0 : i32
    %c0_i32_0 = arith.constant 0 : i32
    %c0_i32_1 = arith.constant 0 : i32
    return %c0_i32, %c0_i32_0, %arg0 : i32, i32, i32
  }
}

</mosaic_0001>

<llo_original>
// kernel: prop_forward.1
$region0: #{prop_forward.1}
  #allocation0 [shape = 'u32[]', space=smem, size = 0x4, offset = 0x4, fixed_abs, tag = 'smem constant byte address 0x4 - core index']
  #allocation1 [shape = 'u32[144,128]{1,0:T(1,128)}', space=vmem, size = 0x12000, scoped, tag = 'internal scratch']
  %s0 = inlined_call_operand.vmem [shape: f32[16,16], index: 0, kind: input, shape index: {}]
  %s1 = inlined_call_operand.vmem [shape: f32[8,4], index: 1, kind: input, shape index: {}]
  %s2 = inlined_call_operand.vmem [shape: f32[8], index: 2, kind: input, shape index: {}]
  %s3 = inlined_call_operand.vmem [shape: f32[4,16,32], index: 3, kind: input, shape index: {}]
  %s4 = inlined_call_operand.vmem [shape: f32[8,16,32], index: 4, kind: output, shape index: {}]
  %s5 = sld [smem:[#allocation0]]
  $region34: #{prop_forward.1} parent=0
    _
  %s7 = ssub.s32 1, %s5
  %s8 = scalar_select 0, %s7, %s5
  $region1: #{prop_forward.1} parent=0
    #allocation2 [shape = 'u8[4096]{0}', space=smem, size = 0x1000, scoped, tag = 'input window, operand 1, single buffered']
    #allocation3 [shape = 's32[1]{0}', space=sflag, size = 0x4, scoped, tag = 'scoped memory for prop_forward.1']
    #allocation4 [shape = 'u8[512]{0}', space=smem, size = 0x200, scoped, tag = 'input window, operand 2, single buffered']
    #allocation5 [shape = 's32[1]{0}', space=sflag, size = 0x4, scoped, tag = 'scoped memory for prop_forward.1']
    %9 = vsyncpa [#allocation3], 0
    %10 = vsyncpa [#allocation5], 0
    // Predicated region
    $region2: #{prop_forward.1} parent=1 // pred_check
      _
    $region3: #{prop_forward.1} parent=1 // pred_check_branch
      %12 = sbr.rel (0) target = $region5
    $region4: #{prop_forward.1} parent=1 // pred_region
      _
    $region5: #{prop_forward.1} parent=1 // pred_fallthru
      _
    // Predicated region
    $region6: #{prop_forward.1} parent=1 // pred_check
      _
    $region7: #{prop_forward.1} parent=1 // pred_check_branch
      %14 = sbr.rel (0) target = $region9
    $region8: #{prop_forward.1} parent=1 // pred_region
      %s16 = ssub.s32 128, 128
      %17 = vsyncadd [#allocation3], %s16
      %s19 = sshll.u32 %s1, 4
      %s20 = int_to_ptr.vmem [resolvable:$true] %s19
      %22 = dma.vmem_to_smem %s20, 128, [#allocation2], [#allocation3]
    $region9: #{prop_forward.1} parent=1 // pred_fallthru
      _
    // Predicated region
    $region10: #{prop_forward.1} parent=1 // pred_check
      _
    $region11: #{prop_forward.1} parent=1 // pred_check_branch
      %24 = sbr.rel (0) target = $region13
    $region12: #{prop_forward.1} parent=1 // pred_region
      %s26 = ssub.s32 16, 16
      %27 = vsyncadd [#allocation5], %s26
      %s29 = sshll.u32 %s2, 4
      %s30 = int_to_ptr.vmem [resolvable:$true] %s29
      %32 = dma.vmem_to_smem %s30, 16, [#allocation4], [#allocation5]
    $region13: #{prop_forward.1} parent=1 // pred_fallthru
      _
    // Predicated region
    $region14: #{prop_forward.1} parent=1 // pred_check
      _
    $region15: #{prop_forward.1} parent=1 // pred_check_branch
      %34 = sbr.rel (0) target = $region17
    $region16: #{prop_forward.1} parent=1 // pred_region
      _
    $region17: #{prop_forward.1} parent=1 // pred_fallthru
      _
    // Predicated region
    $region18: #{prop_forward.1} parent=1 // pred_check
      _
    $region19: #{prop_forward.1} parent=1 // pred_check_branch
      %36 = sbr.rel (0) target = $region21
    $region20: #{prop_forward.1} parent=1 // pred_region
      %37 = dma.done [#allocation3], 128
    $region21: #{prop_forward.1} parent=1 // pred_fallthru
      _
    // Predicated region
    $region22: #{prop_forward.1} parent=1 // pred_check
      _
    $region23: #{prop_forward.1} parent=1 // pred_check_branch
      %39 = sbr.rel (0) target = $region25
    $region24: #{prop_forward.1} parent=1 // pred_region
      %40 = dma.done [#allocation5], 16
    $region25: #{prop_forward.1} parent=1 // pred_fallthru
      _
    %41 = sfence
    %v42 = vld [vmem:[%s0] sm:$0xff]
    %v43 = vld [vmem:[%s0 + $0x8] sm:$0xff]
    %v44 = vld [vmem:[%s3] sm:$0xff]
    %v45 = vld [vmem:[%s3 + $0x8] sm:$0xff]
    %vm46 = vcmask 130048
    %v48 = vsel %vm46, %v42, 0
    %v51 = vsel %vm46, %v43, 0
    %53 = vmatprep.subr.mxu0 0.0
    %54 = vmatpush1.msra.mxu0 %v44
    %55 = vmatprep.subr.mxu0 0.0
    %56 = vmatpush1.msra.mxu0 %v45
    %57 = vmatprep.subr.mxu0 0.0
    %58 = vmatpush1.msra.mxu0 0.0
    %59 = vmatprep.subr.mxu0 0.0
    %60 = vmatpush1.msra.mxu0 0.0
    %61 = vmatprep.subr.mxu0 0.0
    %62 = vmatpush1.msra.mxu0 0.0
    %63 = vmatprep.subr.mxu0 0.0
    %64 = vmatpush1.msra.mxu0 0.0
    %65 = vmatprep.subr.mxu0 0.0
    %66 = vmatpush1.msra.mxu0 0.0
    %67 = vmatprep.subr.mxu0 0.0
    %68 = vmatpush1.msra.mxu0 0.0
    %69 = vmatprep.subr.mxu0 0.0
    %70 = vmatpush1.msra.mxu0 0.0
    %71 = vmatprep.subr.mxu0 0.0
    %72 = vmatpush1.msra.mxu0 0.0
    %73 = vmatprep.subr.mxu0 0.0
    %74 = vmatpush1.msra.mxu0 0.0
    %75 = vmatprep.subr.mxu0 0.0
    %76 = vmatpush1.msra.mxu0 0.0
    %77 = vmatprep.subr.mxu0 0.0
    %78 = vmatpush1.msra.mxu0 0.0
    %79 = vmatprep.subr.mxu0 0.0
    %80 = vmatpush1.msra.mxu0 0.0
    %81 = vmatprep.subr.mxu0 0.0
    %82 = vmatpush1.msra.mxu0 0.0
    %83 = vmatprep.subr.mxu0 0.0
    %84 = vmatpush1.msra.mxu0 0.0
    %85 = vmatprep.subr.mxu0 0.0
    %86 = vmatpush1.msra.mxu0 0.0
    %87 = vmatprep.subr.mxu0 0.0
    %88 = vmatpush1.msra.mxu0 0.0
    %89 = vmatprep.subr.mxu0 0.0
    %90 = vmatpush1.msra.mxu0 0.0
    %91 = vmatprep.subr.mxu0 0.0
    %92 = vmatpush1.msra.mxu0 0.0
    %93 = vmatprep.subr.mxu0 0.0
    %94 = vmatpush1.msra.mxu0 0.0
    %95 = vmatprep.subr.mxu0 0.0
    %96 = vmatpush1.msra.mxu0 0.0
    %97 = vmatprep.subr.mxu0 0.0
    %98 = vmatpush1.msra.mxu0 0.0
    %99 = vmatprep.subr.mxu0 0.0
    %100 = vmatpush1.msra.mxu0 0.0
    %101 = vmatprep.subr.mxu0 0.0
    %102 = vmatpush1.msra.mxu0 0.0
    %103 = vmatprep.subr.mxu0 0.0
    %104 = vmatpush1.msra.mxu0 0.0
    %105 = vmatprep.subr.mxu0 0.0
    %106 = vmatpush1.msra.mxu0 0.0
    %107 = vmatprep.subr.mxu0 0.0
    %108 = vmatpush1.msra.mxu0 0.0
    %109 = vmatprep.subr.mxu0 0.0
    %110 = vmatpush1.msra.mxu0 0.0
    %111 = vmatprep.subr.mxu0 0.0
    %112 = vmatpush1.msra.mxu0 0.0
    %113 = vmatprep.subr.mxu0 0.0
    %114 = vmatpush1.msra.mxu0 0.0
    %115 = vmatprep.subr.mxu0 0.0
    %116 = vmatpush1.msra.mxu0 0.0
    %117 = vmatprep.mubr.f32.mxu0 0.0
    %118 = vmatmul.mubr.f32.gmra.mrb[0].mxu0 %v48
    %v119 = vpop.f32.mrb[0].mxu0
    %v120 = vadd.f32 0.0, %v119
    %v121 = vpop.f32.mrb[0].mxu0
    %122 = vmatprep.mubr.f32.mxu0 0.0
    %123 = vmatmul.mubr.f32.gmra.mrb[0].mxu0 %v51
    %v124 = vpop.f32.mrb[0].mxu0
    %v125 = vadd.f32 0.0, %v124
    %v126 = vpop.f32.mrb[0].mxu0
    %127 = vdwg.mxu0
    %s128 = scalar_lea.vmem %s3, 16
    %v129 = vld [vmem:[%s128] sm:$0xff]
    %v130 = vld [vmem:[%s128 + $0x8] sm:$0xff]
    %131 = vmatprep.subr.mxu0 0.0
    %132 = vmatpush1.msra.mxu0 %v129
    %133 = vmatprep.subr.mxu0 0.0
    %134 = vmatpush1.msra.mxu0 %v130
    %135 = vmatprep.subr.mxu0 0.0
    %136 = vmatpush1.msra.mxu0 0.0
    %137 = vmatprep.subr.mxu0 0.0
    %138 = vmatpush1.msra.mxu0 0.0
    %139 = vmatprep.subr.mxu0 0.0
    %140 = vmatpush1.msra.mxu0 0.0
    %141 = vmatprep.subr.mxu0 0.0
    %142 = vmatpush1.msra.mxu0 0.0
    %143 = vmatprep.subr.mxu0 0.0
    %144 = vmatpush1.msra.mxu0 0.0
    %145 = vmatprep.subr.mxu0 0.0
    %146 = vmatpush1.msra.mxu0 0.0
    %147 = vmatprep.subr.mxu0 0.0
    %148 = vmatpush1.msra.mxu0 0.0
    %149 = vmatprep.subr.mxu0 0.0
    %150 = vmatpush1.msra.mxu0 0.0
    %151 = vmatprep.subr.mxu0 0.0
    %152 = vmatpush1.msra.mxu0 0.0
    %153 = vmatprep.subr.mxu0 0.0
    %154 = vmatpush1.msra.mxu0 0.0
    %155 = vmatprep.subr.mxu0 0.0
    %156 = vmatpush1.msra.mxu0 0.0
    %157 = vmatprep.subr.mxu0 0.0
    %158 = vmatpush1.msra.mxu0 0.0
    %159 = vmatprep.subr.mxu0 0.0
    %160 = vmatpush1.msra.mxu0 0.0
    %161 = vmatprep.subr.mxu0 0.0
    %162 = vmatpush1.msra.mxu0 0.0
    %163 = vmatprep.subr.mxu0 0.0
    %164 = vmatpush1.msra.mxu0 0.0
    %165 = vmatprep.subr.mxu0 0.0
    %166 = vmatpush1.msra.mxu0 0.0
    %167 = vmatprep.subr.mxu0 0.0
    %168 = vmatpush1.msra.mxu0 0.0
    %169 = vmatprep.subr.mxu0 0.0
    %170 = vmatpush1.msra.mxu0 0.0
    %171 = vmatprep.subr.mxu0 0.0
    %172 = vmatpush1.msra.mxu0 0.0
    %173 = vmatprep.subr.mxu0 0.0
    %174 = vmatpush1.msra.mxu0 0.0
    %175 = vmatprep.subr.mxu0 0.0
    %176 = vmatpush1.msra.mxu0 0.0
    %177 = vmatprep.subr.mxu0 0.0
    %178 = vmatpush1.msra.mxu0 0.0
    %179 = vmatprep.subr.mxu0 0.0
    %180 = vmatpush1.msra.mxu0 0.0
    %181 = vmatprep.subr.mxu0 0.0
    %182 = vmatpush1.msra.mxu0 0.0
    %183 = vmatprep.subr.mxu0 0.0
    %184 = vmatpush1.msra.mxu0 0.0
    %185 = vmatprep.subr.mxu0 0.0
    %186 = vmatpush1.msra.mxu0 0.0
    %187 = vmatprep.subr.mxu0 0.0
    %188 = vmatpush1.msra.mxu0 0.0
    %189 = vmatprep.subr.mxu0 0.0
    %190 = vmatpush1.msra.mxu0 0.0
    %191 = vmatprep.subr.mxu0 0.0
    %192 = vmatpush1.msra.mxu0 0.0
    %193 = vmatprep.subr.mxu0 0.0
    %194 = vmatpush1.msra.mxu0 0.0
    %195 = vmatprep.mubr.f32.mxu0 0.0
    %196 = vmatmul.mubr.f32.gmra.mrb[0].mxu0 %v48
    %v197 = vpop.f32.mrb[0].mxu0
    %v198 = vadd.f32 0.0, %v197
    %v199 = vpop.f32.mrb[0].mxu0
    %200 = vmatprep.mubr.f32.mxu0 0.0
    %201 = vmatmul.mubr.f32.gmra.mrb[0].mxu0 %v51
    %v202 = vpop.f32.mrb[0].mxu0
    %v203 = vadd.f32 0.0, %v202
    %v204 = vpop.f32.mrb[0].mxu0
    %205 = vdwg.mxu0
    %s206 = scalar_lea.vmem %s3, 32
    %v207 = vld [vmem:[%s206] sm:$0xff]
    %v208 = vld [vmem:[%s206 + $0x8] sm:$0xff]
    %209 = vmatprep.subr.mxu0 0.0
    %210 = vmatpush1.msra.mxu0 %v207
    %211 = vmatprep.subr.mxu0 0.0
    %212 = vmatpush1.msra.mxu0 %v208
    %213 = vmatprep.subr.mxu0 0.0
    %214 = vmatpush1.msra.mxu0 0.0
    %215 = vmatprep.subr.mxu0 0.0
    %216 = vmatpush1.msra.mxu0 0.0
    %217 = vmatprep.subr.mxu0 0.0
    %218 = vmatpush1.msra.mxu0 0.0
    %219 = vmatprep.subr.mxu0 0.0
    %220 = vmatpush1.msra.mxu0 0.0
    %221 = vmatprep.subr.mxu0 0.0
    %222 = vmatpush1.msra.mxu0 0.0
    %223 = vmatprep.subr.mxu0 0.0
    %224 = vmatpush1.msra.mxu0 0.0
    %225 = vmatprep.subr.mxu0 0.0
    %226 = vmatpush1.msra.mxu0 0.0
    %227 = vmatprep.subr.mxu0 0.0
    %228 = vmatpush1.msra.mxu0 0.0
    %229 = vmatprep.subr.mxu0 0.0
    %230 = vmatpush1.msra.mxu0 0.0
    %231 = vmatprep.subr.mxu0 0.0
    %232 = vmatpush1.msra.mxu0 0.0
    %233 = vmatprep.subr.mxu0 0.0
    %234 = vmatpush1.msra.mxu0 0.0
    %235 = vmatprep.subr.mxu0 0.0
    %236 = vmatpush1.msra.mxu0 0.0
    %237 = vmatprep.subr.mxu0 0.0
    %238 = vmatpush1.msra.mxu0 0.0
    %239 = vmatprep.subr.mxu0 0.0
    %240 = vmatpush1.msra.mxu0 0.0
    %241 = vmatprep.subr.mxu0 0.0
    %242 = vmatpush1.msra.mxu0 0.0
    %243 = vmatprep.subr.mxu0 0.0
    %244 = vmatpush1.msra.mxu0 0.0
    %245 = vmatprep.subr.mxu0 0.0
    %246 = vmatpush1.msra.mxu0 0.0
    %247 = vmatprep.subr.mxu0 0.0
    %248 = vmatpush1.msra.mxu0 0.0
    %249 = vmatprep.subr.mxu0 0.0
    %250 = vmatpush1.msra.mxu0 0.0
    %251 = vmatprep.subr.mxu0 0.0
    %252 = vmatpush1.msra.mxu0 0.0
    %253 = vmatprep.subr.mxu0 0.0
    %254 = vmatpush1.msra.mxu0 0.0
    %255 = vmatprep.subr.mxu0 0.0
    %256 = vmatpush1.msra.mxu0 0.0
    %257 = vmatprep.subr.mxu0 0.0
    %258 = vmatpush1.msra.mxu0 0.0
    %259 = vmatprep.subr.mxu0 0.0
    %260 = vmatpush1.msra.mxu0 0.0
    %261 = vmatprep.subr.mxu0 0.0
    %262 = vmatpush1.msra.mxu0 0.0
    %263 = vmatprep.subr.mxu0 0.0
    %264 = vmatpush1.msra.mxu0 0.0
    %265 = vmatprep.subr.mxu0 0.0
    %266 = vmatpush1.msra.mxu0 0.0
    %267 = vmatprep.subr.mxu0 0.0
    %268 = vmatpush1.msra.mxu0 0.0
    %269 = vmatprep.subr.mxu0 0.0
    %270 = vmatpush1.msra.mxu0 0.0
    %271 = vmatprep.subr.mxu0 0.0
    %272 = vmatpush1.msra.mxu0 0.0
    %273 = vmatprep.mubr.f32.mxu0 0.0
    %274 = vmatmul.mubr.f32.gmra.mrb[0].mxu0 %v48
    %v275 = vpop.f32.mrb[0].mxu0
    %v276 = vadd.f32 0.0, %v275
    %v277 = vpop.f32.mrb[0].mxu0
    %278 = vmatprep.mubr.f32.mxu0 0.0
    %279 = vmatmul.mubr.f32.gmra.mrb[0].mxu0 %v51
    %v280 = vpop.f32.mrb[0].mxu0
    %v281 = vadd.f32 0.0, %v280
    %v282 = vpop.f32.mrb[0].mxu0
    %283 = vdwg.mxu0
    %s284 = scalar_lea.vmem %s3, 48
    %v285 = vld [vmem:[%s284] sm:$0xff]
    %v286 = vld [vmem:[%s284 + $0x8] sm:$0xff]
    %287 = vmatprep.subr.mxu0 0.0
    %288 = vmatpush1.msra.mxu0 %v285
    %289 = vmatprep.subr.mxu0 0.0
    %290 = vmatpush1.msra.mxu0 %v286
    %291 = vmatprep.subr.mxu0 0.0
    %292 = vmatpush1.msra.mxu0 0.0
    %293 = vmatprep.subr.mxu0 0.0
    %294 = vmatpush1.msra.mxu0 0.0
    %295 = vmatprep.subr.mxu0 0.0
    %296 = vmatpush1.msra.mxu0 0.0
    %297 = vmatprep.subr.mxu0 0.0
    %298 = vmatpush1.msra.mxu0 0.0
    %299 = vmatprep.subr.mxu0 0.0
    %300 = vmatpush1.msra.mxu0 0.0
    %301 = vmatprep.subr.mxu0 0.0
    %302 = vmatpush1.msra.mxu0 0.0
    %303 = vmatprep.subr.mxu0 0.0
    %304 = vmatpush1.msra.mxu0 0.0
    %305 = vmatprep.subr.mxu0 0.0
    %306 = vmatpush1.msra.mxu0 0.0
    %307 = vmatprep.subr.mxu0 0.0
    %308 = vmatpush1.msra.mxu0 0.0
    %309 = vmatprep.subr.mxu0 0.0
    %310 = vmatpush1.msra.mxu0 0.0
    %311 = vmatprep.subr.mxu0 0.0
    %312 = vmatpush1.msra.mxu0 0.0
    %313 = vmatprep.subr.mxu0 0.0
    %314 = vmatpush1.msra.mxu0 0.0
    %315 = vmatprep.subr.mxu0 0.0
    %316 = vmatpush1.msra.mxu0 0.0
    %317 = vmatprep.subr.mxu0 0.0
    %318 = vmatpush1.msra.mxu0 0.0
    %319 = vmatprep.subr.mxu0 0.0
    %320 = vmatpush1.msra.mxu0 0.0
    %321 = vmatprep.subr.mxu0 0.0
    %322 = vmatpush1.msra.mxu0 0.0
    %323 = vmatprep.subr.mxu0 0.0
    %324 = vmatpush1.msra.mxu0 0.0
    %325 = vmatprep.subr.mxu0 0.0
    %326 = vmatpush1.msra.mxu0 0.0
    %327 = vmatprep.subr.mxu0 0.0
    %328 = vmatpush1.msra.mxu0 0.0
    %329 = vmatprep.subr.mxu0 0.0
    %330 = vmatpush1.msra.mxu0 0.0
    %331 = vmatprep.subr.mxu0 0.0
    %332 = vmatpush1.msra.mxu0 0.0
    %333 = vmatprep.subr.mxu0 0.0
    %334 = vmatpush1.msra.mxu0 0.0
    %335 = vmatprep.subr.mxu0 0.0
    %336 = vmatpush1.msra.mxu0 0.0
    %337 = vmatprep.subr.mxu0 0.0
    %338 = vmatpush1.msra.mxu0 0.0
    %339 = vmatprep.subr.mxu0 0.0
    %340 = vmatpush1.msra.mxu0 0.0
    %341 = vmatprep.subr.mxu0 0.0
    %342 = vmatpush1.msra.mxu0 0.0
    %343 = vmatprep.subr.mxu0 0.0
    %344 = vmatpush1.msra.mxu0 0.0
    %345 = vmatprep.subr.mxu0 0.0
    %346 = vmatpush1.msra.mxu0 0.0
    %347 = vmatprep.subr.mxu0 0.0
    %348 = vmatpush1.msra.mxu0 0.0
    %349 = vmatprep.subr.mxu0 0.0
    %350 = vmatpush1.msra.mxu0 0.0
    %351 = vmatprep.mubr.f32.mxu0 0.0
    %352 = vmatmul.mubr.f32.gmra.mrb[0].mxu0 %v48
    %v353 = vpop.f32.mrb[0].mxu0
    %v354 = vadd.f32 0.0, %v353
    %v355 = vpop.f32.mrb[0].mxu0
    %356 = vmatprep.mubr.f32.mxu0 0.0
    %357 = vmatmul.mubr.f32.gmra.mrb[0].mxu0 %v51
    %v358 = vpop.f32.mrb[0].mxu0
    %v359 = vadd.f32 0.0, %v358
    %v360 = vpop.f32.mrb[0].mxu0
    %361 = vdwg.mxu0
    %s362 = sld [smem:[#allocation2]]
    %v363 = vstv %s362
    %v364 = vmul.f32 %v120, %v363
    %v365 = vmul.f32 %v125, %v363
    %s366 = sld [smem:[#allocation2 + $0x1]]
    %v367 = vstv %s366
    %v368 = vmul.f32 %v198, %v367
    %v369 = vmul.f32 %v203, %v367
    %v370 = vadd.f32 %v364, %v368
    %v371 = vadd.f32 %v365, %v369
    %s372 = sld [smem:[#allocation2 + $0x2]]
    %v373 = vstv %s372
    %v374 = vmul.f32 %v276, %v373
    %v375 = vmul.f32 %v281, %v373
    %v376 = vadd.f32 %v370, %v374
    %v377 = vadd.f32 %v371, %v375
    %s378 = sld [smem:[#allocation2 + $0x3]]
    %v379 = vstv %s378
    %v380 = vmul.f32 %v354, %v379
    %v381 = vmul.f32 %v359, %v379
    %v382 = vadd.f32 %v376, %v380
    %v383 = vadd.f32 %v377, %v381
    %s384 = sld [smem:[#allocation4]]
    %v385 = vstv %s384
    %v386 = vadd.f32 %v382, %v385
    %v387 = vadd.f32 %v383, %v385
    %vm388 = vcmask 261120
    %389 = vst.msk [vmem:[%s4] sm:$0xff] %vm388, %v386
    %390 = vst.msk [vmem:[%s4 + $0x8] sm:$0xff] %vm388, %v387
    %s391 = sld [smem:[#allocation2 + $0x80]]
    %v392 = vstv %s391
    %v393 = vmul.f32 %v120, %v392
    %v394 = vmul.f32 %v125, %v392
    %s395 = sld [smem:[#allocation2 + $0x81]]
    %v396 = vstv %s395
    %v397 = vmul.f32 %v198, %v396
    %v398 = vmul.f32 %v203, %v396
    %v399 = vadd.f32 %v393, %v397
    %v400 = vadd.f32 %v394, %v398
    %s401 = sld [smem:[#allocation2 + $0x82]]
    %v402 = vstv %s401
    %v403 = vmul.f32 %v276, %v402
    %v404 = vmul.f32 %v281, %v402
    %v405 = vadd.f32 %v399, %v403
    %v406 = vadd.f32 %v400, %v404
    %s407 = sld [smem:[#allocation2 + $0x83]]
    %v408 = vstv %s407
    %v409 = vmul.f32 %v354, %v408
    %v410 = vmul.f32 %v359, %v408
    %v411 = vadd.f32 %v405, %v409
    %v412 = vadd.f32 %v406, %v410
    %s413 = sld [smem:[#allocation4 + $0x1]]
    %v414 = vstv %s413
    %v415 = vadd.f32 %v411, %v414
    %v416 = vadd.f32 %v412, %v414
    %s417 = scalar_lea.vmem %s4, 16
    %418 = vst.msk [vmem:[%s417] sm:$0xff] %vm388, %v415
    %419 = vst.msk [vmem:[%s417 + $0x8] sm:$0xff] %vm388, %v416
    %s420 = sld [smem:[#allocation2 + $0x100]]
    %v421 = vstv %s420
    %v422 = vmul.f32 %v120, %v421
    %v423 = vmul.f32 %v125, %v421
    %s424 = sld [smem:[#allocation2 + $0x101]]
    %v425 = vstv %s424
    %v426 = vmul.f32 %v198, %v425
    %v427 = vmul.f32 %v203, %v425
    %v428 = vadd.f32 %v422, %v426
    %v429 = vadd.f32 %v423, %v427
    %s430 = sld [smem:[#allocation2 + $0x102]]
    %v431 = vstv %s430
    %v432 = vmul.f32 %v276, %v431
    %v433 = vmul.f32 %v281, %v431
    %v434 = vadd.f32 %v428, %v432
    %v435 = vadd.f32 %v429, %v433
    %s436 = sld [smem:[#allocation2 + $0x103]]
    %v437 = vstv %s436
    %v438 = vmul.f32 %v354, %v437
    %v439 = vmul.f32 %v359, %v437
    %v440 = vadd.f32 %v434, %v438
    %v441 = vadd.f32 %v435, %v439
    %s442 = sld [smem:[#allocation4 + $0x2]]
    %v443 = vstv %s442
    %v444 = vadd.f32 %v440, %v443
    %v445 = vadd.f32 %v441, %v443
    %s446 = scalar_lea.vmem %s4, 32
    %447 = vst.msk [vmem:[%s446] sm:$0xff] %vm388, %v444
    %448 = vst.msk [vmem:[%s446 + $0x8] sm:$0xff] %vm388, %v445
    %s449 = sld [smem:[#allocation2 + $0x180]]
    %v450 = vstv %s449
    %v451 = vmul.f32 %v120, %v450
    %v452 = vmul.f32 %v125, %v450
    %s453 = sld [smem:[#allocation2 + $0x181]]
    %v454 = vstv %s453
    %v455 = vmul.f32 %v198, %v454
    %v456 = vmul.f32 %v203, %v454
    %v457 = vadd.f32 %v451, %v455
    %v458 = vadd.f32 %v452, %v456
    %s459 = sld [smem:[#allocation2 + $0x182]]
    %v460 = vstv %s459
    %v461 = vmul.f32 %v276, %v460
    %v462 = vmul.f32 %v281, %v460
    %v463 = vadd.f32 %v457, %v461
    %v464 = vadd.f32 %v458, %v462
    %s465 = sld [smem:[#allocation2 + $0x183]]
    %v466 = vstv %s465
    %v467 = vmul.f32 %v354, %v466
    %v468 = vmul.f32 %v359, %v466
    %v469 = vadd.f32 %v463, %v467
    %v470 = vadd.f32 %v464, %v468
    %s471 = sld [smem:[#allocation4 + $0x3]]
    %v472 = vstv %s471
    %v473 = vadd.f32 %v469, %v472
    %v474 = vadd.f32 %v470, %v472
    %s475 = scalar_lea.vmem %s4, 48
    %476 = vst.msk [vmem:[%s475] sm:$0xff] %vm388, %v473
    %477 = vst.msk [vmem:[%s475 + $0x8] sm:$0xff] %vm388, %v474
    %s478 = sld [smem:[#allocation2 + $0x200]]
    %v479 = vstv %s478
    %v480 = vmul.f32 %v120, %v479
    %v481 = vmul.f32 %v125, %v479
    %s482 = sld [smem:[#allocation2 + $0x201]]
    %v483 = vstv %s482
    %v484 = vmul.f32 %v198, %v483
    %v485 = vmul.f32 %v203, %v483
    %v486 = vadd.f32 %v480, %v484
    %v487 = vadd.f32 %v481, %v485
    %s488 = sld [smem:[#allocation2 + $0x202]]
    %v489 = vstv %s488
    %v490 = vmul.f32 %v276, %v489
    %v491 = vmul.f32 %v281, %v489
    %v492 = vadd.f32 %v486, %v490
    %v493 = vadd.f32 %v487, %v491
    %s494 = sld [smem:[#allocation2 + $0x203]]
    %v495 = vstv %s494
    %v496 = vmul.f32 %v354, %v495
    %v497 = vmul.f32 %v359, %v495
    %v498 = vadd.f32 %v492, %v496
    %v499 = vadd.f32 %v493, %v497
    %s500 = sld [smem:[#allocation4 + $0x4]]
    %v501 = vstv %s500
    %v502 = vadd.f32 %v498, %v501
    %v503 = vadd.f32 %v499, %v501
    %s504 = scalar_lea.vmem %s4, 64
    %505 = vst.msk [vmem:[%s504] sm:$0xff] %vm388, %v502
    %506 = vst.msk [vmem:[%s504 + $0x8] sm:$0xff] %vm388, %v503
    %s507 = sld [smem:[#allocation2 + $0x280]]
    %v508 = vstv %s507
    %v509 = vmul.f32 %v120, %v508
    %v510 = vmul.f32 %v125, %v508
    %s511 = sld [smem:[#allocation2 + $0x281]]
    %v512 = vstv %s511
    %v513 = vmul.f32 %v198, %v512
    %v514 = vmul.f32 %v203, %v512
    %v515 = vadd.f32 %v509, %v513
    %v516 = vadd.f32 %v510, %v514
    %s517 = sld [smem:[#allocation2 + $0x282]]
    %v518 = vstv %s517
    %v519 = vmul.f32 %v276, %v518
    %v520 = vmul.f32 %v281, %v518
    %v521 = vadd.f32 %v515, %v519
    %v522 = vadd.f32 %v516, %v520
    %s523 = sld [smem:[#allocation2 + $0x283]]
    %v524 = vstv %s523
    %v525 = vmul.f32 %v354, %v524
    %v526 = vmul.f32 %v359, %v524
    %v527 = vadd.f32 %v521, %v525
    %v528 = vadd.f32 %v522, %v526
    %s529 = sld [smem:[#allocation4 + $0x5]]
    %v530 = vstv %s529
    %v531 = vadd.f32 %v527, %v530
    %v532 = vadd.f32 %v528, %v530
    %s533 = scalar_lea.vmem %s4, 80
    %534 = vst.msk [vmem:[%s533] sm:$0xff] %vm388, %v531
    %535 = vst.msk [vmem:[%s533 + $0x8] sm:$0xff] %vm388, %v532
    %s536 = sld [smem:[#allocation2 + $0x300]]
    %v537 = vstv %s536
    %v538 = vmul.f32 %v120, %v537
    %v539 = vmul.f32 %v125, %v537
    %s540 = sld [smem:[#allocation2 + $0x301]]
    %v541 = vstv %s540
    %v542 = vmul.f32 %v198, %v541
    %v543 = vmul.f32 %v203, %v541
    %v544 = vadd.f32 %v538, %v542
    %v545 = vadd.f32 %v539, %v543
    %s546 = sld [smem:[#allocation2 + $0x302]]
    %v547 = vstv %s546
    %v548 = vmul.f32 %v276, %v547
    %v549 = vmul.f32 %v281, %v547
    %v550 = vadd.f32 %v544, %v548
    %v551 = vadd.f32 %v545, %v549
    %s552 = sld [smem:[#allocation2 + $0x303]]
    %v553 = vstv %s552
    %v554 = vmul.f32 %v354, %v553
    %v555 = vmul.f32 %v359, %v553
    %v556 = vadd.f32 %v550, %v554
    %v557 = vadd.f32 %v551, %v555
    %s558 = sld [smem:[#allocation4 + $0x6]]
    %v559 = vstv %s558
    %v560 = vadd.f32 %v556, %v559
    %v561 = vadd.f32 %v557, %v559
    %s562 = scalar_lea.vmem %s4, 96
    %563 = vst.msk [vmem:[%s562] sm:$0xff] %vm388, %v560
    %564 = vst.msk [vmem:[%s562 + $0x8] sm:$0xff] %vm388, %v561
    %s565 = sld [smem:[#allocation2 + $0x380]]
    %v566 = vstv %s565
    %v567 = vmul.f32 %v120, %v566
    %v568 = vmul.f32 %v125, %v566
    %s569 = sld [smem:[#allocation2 + $0x381]]
    %v570 = vstv %s569
    %v571 = vmul.f32 %v198, %v570
    %v572 = vmul.f32 %v203, %v570
    %v573 = vadd.f32 %v567, %v571
    %v574 = vadd.f32 %v568, %v572
    %s575 = sld [smem:[#allocation2 + $0x382]]
    %v576 = vstv %s575
    %v577 = vmul.f32 %v276, %v576
    %v578 = vmul.f32 %v281, %v576
    %v579 = vadd.f32 %v573, %v577
    %v580 = vadd.f32 %v574, %v578
    %s581 = sld [smem:[#allocation2 + $0x383]]
    %v582 = vstv %s581
    %v583 = vmul.f32 %v354, %v582
    %v584 = vmul.f32 %v359, %v582
    %v585 = vadd.f32 %v579, %v583
    %v586 = vadd.f32 %v580, %v584
    %s587 = sld [smem:[#allocation4 + $0x7]]
    %v588 = vstv %s587
    %v589 = vadd.f32 %v585, %v588
    %v590 = vadd.f32 %v586, %v588
    %s591 = scalar_lea.vmem %s4, 112
    %592 = vst.msk [vmem:[%s591] sm:$0xff] %vm388, %v589
    %593 = vst.msk [vmem:[%s591 + $0x8] sm:$0xff] %vm388, %v590
    // Predicated region
    $region26: #{prop_forward.1} parent=1 // pred_check
      _
    $region27: #{prop_forward.1} parent=1 // pred_check_branch
      %595 = sbr.rel (0) target = $region29
    $region28: #{prop_forward.1} parent=1 // pred_region
      _
    $region29: #{prop_forward.1} parent=1 // pred_fallthru
      _
    // Predicated region
    $region30: #{prop_forward.1} parent=1 // pred_check
      _
    $region31: #{prop_forward.1} parent=1 // pred_check_branch
      %597 = sbr.rel (0) target = $region33
    $region32: #{prop_forward.1} parent=1 // pred_region
      _
    $region33: #{prop_forward.1} parent=1 // pred_fallthru
      _
    %598 = vsyncpa [#allocation3], 1
    %599 = vsyncpa [#allocation5], 1

</llo_original>
